<compile_context>
chip_gen: v5e
topology: v5e:2x2
jax: 0.10.0
libtpu: 0.0.40
codegen_flags: <defaults>
</compile_context>

<pallas_src>
import numpy as np
import jax
import jax.numpy as jnp
from jax import lax
from jax.experimental import pallas as pl
from jax.experimental.pallas import tpu as pltpu


# ----------------------------------------------------------------------------
# Reflection-pad index helper (matches nn.ReflectionPad2d((0, 0, p, p)))
# ----------------------------------------------------------------------------
def _reflect_indices(seq_len, pad):
    hp = seq_len + 2 * pad
    idx = np.zeros((hp,), np.int64)
    for i in range(hp):
        j = i - pad
        if j < 0:
            j = -j
        elif j >= seq_len:
            j = 2 * (seq_len - 1) - j
        idx[i] = j
    return idx


# ----------------------------------------------------------------------------
# Fold the whole network (after the embedding) into three constant matrices
# ----------------------------------------------------------------------------
def fold_weights(params, *, max_seq, ks):
    p = ks - 1
    hp = max_seq + 2 * p          # layer-1 padded rows
    h1 = hp - ks + 1              # conv1 output rows (= max_seq + ks - 1)
    h2 = h1                       # conv2 output rows (same formula)
    w1_pt = np.asarray(params["w1_pt"], np.float32)   # (K, E, ks, 1)
    w2_pt = np.asarray(params["w2_pt"], np.float32)   # (K, K, ks, 1)
    wl_pt = np.asarray(params["wl_pt"], np.float32)   # (C, 2K)
    b1 = np.asarray(params["b1"], np.float32)
    b2 = np.asarray(params["b2"], np.float32)
    bl = np.asarray(params["bl"], np.float32)
    K, E = w1_pt.shape[0], w1_pt.shape[1]
    ncls = wl_pt.shape[0]
    c_pad = max(128, -(-ncls // 128) * 128)           # lane-dense output width

    # ---- conv1 as one dense banded matmul: (hp*E) -> (h1*K) ----------------
    w1_big = np.zeros((hp * E, h1 * K), np.float32)
    for j in range(h1):
        for tap in range(ks):
            i = j + tap
            w1_big[i * E:(i + 1) * E, j * K:(j + 1) * K] = w1_pt[:, :, tap, 0].T

    # ---- avgpool(ks)/ks + reflection pad + conv2 folded: (h1*K) -> (h2*K) --
    refl = _reflect_indices(max_seq, p)
    w2_fold = np.zeros((h1 * K, h2 * K), np.float32)
    for t in range(h2):
        for tap in range(ks):
            s = int(refl[t + tap])                    # pooled row index
            blk = w2_pt[:, :, tap, 0].T / ks          # (in=c, out=k)
            for d in range(ks):
                j = s + d                             # conv1-output row index
                w2_fold[j * K:(j + 1) * K, t * K:(t + 1) * K] += blk

    # ---- final avgpool (mean over h2) + branch concat + Linear head --------
    wl = wl_pt.T                                      # (2K, C)
    w_head = np.zeros((2 * h2 * K, c_pad), np.float32)
    w_head[:h2 * K, :ncls] = np.tile(wl[:K, :], (h2, 1)) / h2
    w_head[h2 * K:, :ncls] = np.tile(wl[K:, :], (h2, 1)) / h2

    b1_t = np.tile(b1, h1).reshape(1, h1 * K)
    b2_t = np.tile(b2, h2).reshape(1, h2 * K)
    bl_p = np.zeros((1, c_pad), np.float32)
    bl_p[0, :ncls] = bl

    return dict(
        w1=jnp.asarray(w1_big, jnp.bfloat16),
        b1=jnp.asarray(b1_t, jnp.float32),
        w2=jnp.asarray(w2_fold, jnp.bfloat16),
        b2=jnp.asarray(b2_t, jnp.float32),
        wh=jnp.asarray(w_head, jnp.bfloat16),
        bh=jnp.asarray(bl_p, jnp.float32),
        dims=dict(hp=hp, h1=h1, h2=h2, c_pad=c_pad, ncls=ncls, emb=E, knum=K),
    )


# ----------------------------------------------------------------------------
# Pallas kernel: three 2-D matmuls per batch chunk
# ----------------------------------------------------------------------------
def make_kernel(*, tb):
    def kernel(x_ref, w1_ref, b1_ref, w2_ref, b2_ref, wh_ref, bh_ref, out_ref):
        x = x_ref[...]                                              # (2*tb, hp*E) bf16
        # conv1 (+ bias, ReLU)
        z1 = jnp.dot(x, w1_ref[...], preferred_element_type=jnp.float32)
        a1 = jnp.maximum(z1 + b1_ref[...], 0.0).astype(jnp.bfloat16)      # (2*tb, h1*K)
        # avgpool(ks) + reflection pad + conv2 (+ bias, ReLU), folded into w2
        z2 = jnp.dot(a1, w2_ref[...], preferred_element_type=jnp.float32)
        a2 = jnp.maximum(z2 + b2_ref[...], 0.0).astype(jnp.bfloat16)      # (2*tb, h2*K)
        # final avgpool + branch concat + Linear, folded into w_head
        feats = jnp.concatenate([a2[:tb, :], a2[tb:, :]], axis=-1)        # (tb, 2*h2*K)
        out_ref[...] = (jnp.dot(feats, wh_ref[...],
                                preferred_element_type=jnp.float32)
                        + bh_ref[...])                                    # (tb, 128) f32
    return kernel


# ----------------------------------------------------------------------------
# Glue: embedding lookup + sentence padding (plain JAX)
# ----------------------------------------------------------------------------
def embed_and_pad(tokens, embed_table, max_seq, ks):
    # TODO(synk): embedding gather stays in plain JAX (data-dependent HBM gather).
    x = embed_table[tokens]                                 # (B, L, E)
    if x.shape[1] > max_seq:                                # truncate
        x = x[:, :max_seq, :]
    while x.shape[1] < max_seq:                             # sentence_pad
        x = jnp.concatenate([x, x[:, -2:-1, :]], axis=1)
    p = ks - 1                                              # layer1 ReflectionPad2d
    return jnp.pad(x, ((0, 0), (p, p), (0, 0)), mode="reflect")


def _choose_tb(B, max_tb=128):
    if B < 16:
        return B                          # single chunk; block == full dims
    # multiple of 8, at least two chunks so v7x's second TensorCore is used
    tb = (-(-B // 2) + 7) // 8 * 8
    return min(max_tb, tb)


def siamese_cnn_forward(tok1, tok2, params, folded, *, max_seq, ks, max_tb=128):
    assert ks == 3, "final AvgPool window equals conv2 output only for ks == 3"
    dims = folded["dims"]
    hp, emb, c_pad, ncls = dims["hp"], dims["emb"], dims["c_pad"], dims["ncls"]
    l_in = hp * emb
    l1 = folded["b1"].shape[1]
    l2 = folded["b2"].shape[1]

    x1 = embed_and_pad(tok1, params["embed"], max_seq, ks)   # (B, hp, E)
    x2 = embed_and_pad(tok2, params["embed"], max_seq, ks)
    B = x1.shape[0]

    tb = _choose_tb(B, max_tb)
    grid = -(-B // tb)
    bp = grid * tb

    def prep(x):
        x = x.reshape(B, l_in)
        if bp != B:
            x = jnp.pad(x, ((0, bp - B), (0, 0)))
        return x

    # chunk-interleaved branch-major layout: within each chunk of 2*tb rows,
    # rows [0, tb) are sentence_1 and rows [tb, 2*tb) are sentence_2 of the
    # same tb samples (wrapper-side layout plumbing, free in XLA).
    x_st = jnp.stack([prep(x1), prep(x2)], axis=0)           # (2, bp, l_in)
    x_in = (x_st.reshape(2, grid, tb, l_in)
                .transpose(1, 0, 2, 3)
                .reshape(2 * bp, l_in)
                .astype(jnp.bfloat16))

    kernel = make_kernel(tb=tb)
    out = pl.pallas_call(
        kernel,
        out_shape=jax.ShapeDtypeStruct((bp, c_pad), jnp.float32),
        grid=(grid,),
        in_specs=[
            pl.BlockSpec((2 * tb, l_in), lambda g: (g, 0)),
            pl.BlockSpec((l_in, l1), lambda g: (0, 0)),
            pl.BlockSpec((1, l1), lambda g: (0, 0)),
            pl.BlockSpec((l1, l2), lambda g: (0, 0)),
            pl.BlockSpec((1, l2), lambda g: (0, 0)),
            pl.BlockSpec((2 * l2, c_pad), lambda g: (0, 0)),
            pl.BlockSpec((1, c_pad), lambda g: (0, 0)),
        ],
        out_specs=pl.BlockSpec((tb, c_pad), lambda g: (g, 0)),
        compiler_params=pltpu.CompilerParams(
            dimension_semantics=("parallel",),
            vmem_limit_bytes=48 * 1024 * 1024),
    )(x_in, folded["w1"], folded["b1"], folded["w2"], folded["b2"],
      folded["wh"], folded["bh"])
    return out[:B, :ncls]


# ----------------------------------------------------------------------------
# Deterministic parameter init (PyTorch-shaped)
# ----------------------------------------------------------------------------
def init_params(key, vocab, num_classes, emb, ks, knum):
    kk = jax.random.split(key, 7)
    embed = jax.random.normal(kk[0], (vocab, emb), jnp.float32)
    w1_pt = jax.random.normal(kk[1], (knum, emb, ks, 1), jnp.float32) / np.sqrt(emb * ks)
    b1 = jax.random.normal(kk[2], (knum,), jnp.float32) * 0.1
    w2_pt = jax.random.normal(kk[3], (knum, knum, ks, 1), jnp.float32) / np.sqrt(knum * ks)
    b2 = jax.random.normal(kk[4], (knum,), jnp.float32) * 0.1
    wl_pt = jax.random.normal(kk[5], (num_classes, 2 * knum), jnp.float32) / np.sqrt(2 * knum)
    bl = jax.random.normal(kk[6], (num_classes,), jnp.float32) * 0.1
    return dict(embed=embed, w1_pt=w1_pt, b1=b1, w2_pt=w2_pt, b2=b2,
                wl_pt=wl_pt, bl=bl)


# ----------------------------------------------------------------------------
# Pure-JAX reference mirroring the PyTorch NCHW semantics (f32)
# ----------------------------------------------------------------------------
def reference_forward(tok1, tok2, params, *, max_seq, ks):
    def siamese(tok):
        x = params["embed"][tok]                       # (B, L, E)
        x = x[:, None, :, :]                           # unsqueeze(1)
        x = jnp.transpose(x, (0, 3, 2, 1))             # (B, E, L, 1)  NCHW
        if x.shape[2] > max_seq:
            x = x[:, :, :max_seq, :]
        while x.shape[2] < max_seq:
            x = jnp.concatenate([x, x[:, :, -2:-1, :]], axis=2)
        p = ks - 1
        xp = jnp.pad(x, ((0, 0), (0, 0), (p, p), (0, 0)), mode="reflect")
        c = lax.conv_general_dilated(xp, params["w1_pt"], (1, 1), "VALID",
                                     dimension_numbers=("NCHW", "OIHW", "NCHW"))
        c = jnp.maximum(c + params["b1"][None, :, None, None], 0.0)
        c = lax.reduce_window(c, 0.0, lax.add, (1, 1, ks, 1), (1, 1, 1, 1),
                              "VALID") / ks
        xp = jnp.pad(c, ((0, 0), (0, 0), (p, p), (0, 0)), mode="reflect")
        c = lax.conv_general_dilated(xp, params["w2_pt"], (1, 1), "VALID",
                                     dimension_numbers=("NCHW", "OIHW", "NCHW"))
        c = jnp.maximum(c + params["b2"][None, :, None, None], 0.0)
        win = max_seq + 2
        c = lax.reduce_window(c, 0.0, lax.add, (1, 1, win, 1), (1, 1, 1, 1),
                              "VALID") / win
        return c.reshape(c.shape[0], -1)               # (B, K)

    r1 = siamese(tok1)
    r2 = siamese(tok2)
    sim = jnp.concatenate([r1, r2], axis=1)
    return sim @ params["wl_pt"].T + params["bl"]


# ----------------------------------------------------------------------------
if __name__ == "__main__":
    VOCAB, NUM_CLASSES = 50, 3
    EMB, MAX_SEQ, KS, KNUM = 16, 8, 3, 32
    B, SEQ = 2, 8

    key = jax.random.PRNGKey(0)
    kp, k1, k2 = jax.random.split(key, 3)
    params = init_params(kp, VOCAB, NUM_CLASSES, EMB, KS, KNUM)
    folded = fold_weights(params, max_seq=MAX_SEQ, ks=KS)
    tok1 = jax.random.randint(k1, (B, SEQ), 0, VOCAB)
    tok2 = jax.random.randint(k2, (B, SEQ), 0, VOCAB)

    out = siamese_cnn_forward(tok1, tok2, params, folded, max_seq=MAX_SEQ, ks=KS)
    out = jax.block_until_ready(out)

    ref = reference_forward(tok1, tok2, params, max_seq=MAX_SEQ, ks=KS)
    assert out.shape == (B, NUM_CLASSES)
    # Accuracy contract: bf16 operands / f32 accumulation on the MXU vs a pure
    # f32 reference -> mixed-precision tolerance.
    np.testing.assert_allclose(np.asarray(out), np.asarray(ref),
                               rtol=3e-2, atol=3e-2)
    print("KERNEL_OK")
</pallas_src>

<mosaic_0001>
module attributes {stable_mosaic.version = 11 : i64} {
  func.func @kernel(%arg0: i32, %arg1: memref<4x192xbf16, #tpu.memory_space<vmem>>, %arg2: memref<192x320xbf16, #tpu.memory_space<vmem>>, %arg3: memref<1x320xf32, #tpu.memory_space<vmem>>, %arg4: memref<320x320xbf16, #tpu.memory_space<vmem>>, %arg5: memref<1x320xf32, #tpu.memory_space<vmem>>, %arg6: memref<640x128xbf16, #tpu.memory_space<vmem>>, %arg7: memref<1x128xf32, #tpu.memory_space<vmem>>, %arg8: memref<2x128xf32, #tpu.memory_space<vmem>>) attributes {dimension_semantics = [#tpu.dimension_semantics<parallel>], iteration_bounds = array<i64: 1>, scalar_prefetch = 0 : i64, scratch_operands = 0 : i64, tpu.core_type = #tpu.core_type<tc>, window_params = [{transform_indices = @transform_0, window_bounds = array<i64: 4, 192>}, {pipeline_mode = #tpu.pipeline_mode<synchronous>, transform_indices = @transform_1, window_bounds = array<i64: 192, 320>}, {pipeline_mode = #tpu.pipeline_mode<synchronous>, transform_indices = @transform_2, window_bounds = array<i64: 1, 320>}, {pipeline_mode = #tpu.pipeline_mode<synchronous>, transform_indices = @transform_3, window_bounds = array<i64: 320, 320>}, {pipeline_mode = #tpu.pipeline_mode<synchronous>, transform_indices = @transform_4, window_bounds = array<i64: 1, 320>}, {pipeline_mode = #tpu.pipeline_mode<synchronous>, transform_indices = @transform_5, window_bounds = array<i64: 640, 128>}, {pipeline_mode = #tpu.pipeline_mode<synchronous>, transform_indices = @transform_6, window_bounds = array<i64: 1, 128>}, {transform_indices = @transform_7, window_bounds = array<i64: 2, 128>}]} {
    %c0 = arith.constant 0 : index
    %c0_0 = arith.constant 0 : index
    %0 = vector.load %arg1[%c0, %c0_0] : memref<4x192xbf16, #tpu.memory_space<vmem>>, vector<4x192xbf16>
    %c0_1 = arith.constant 0 : index
    %c0_2 = arith.constant 0 : index
    %1 = vector.load %arg2[%c0_1, %c0_2] : memref<192x320xbf16, #tpu.memory_space<vmem>>, vector<192x320xbf16>
    %cst = arith.constant dense<0.000000e+00> : vector<4x320xf32>
    %2 = tpu.matmul %0, %1, %cst {dimension_numbers = #tpu.dot_dimension_numbers<[1], [0], [0], [1], [0, 0, 1, 1], [], []>} : vector<4x192xbf16>, vector<192x320xbf16>, vector<4x320xf32> -> vector<4x320xf32>
    %c0_3 = arith.constant 0 : index
    %c0_4 = arith.constant 0 : index
    %3 = vector.load %arg3[%c0_3, %c0_4] : memref<1x320xf32, #tpu.memory_space<vmem>>, vector<1x320xf32>
    %4 = vector.broadcast %3 : vector<1x320xf32> to vector<4x320xf32>
    %5 = arith.addf %2, %4 : vector<4x320xf32>
    %cst_5 = arith.constant 0.000000e+00 : f32
    %6 = vector.broadcast %cst_5 : f32 to vector<4x320xf32>
    %7 = arith.maximumf %5, %6 : vector<4x320xf32>
    %8 = arith.truncf %7 : vector<4x320xf32> to vector<4x320xbf16>
    %c0_6 = arith.constant 0 : index
    %c0_7 = arith.constant 0 : index
    %9 = vector.load %arg4[%c0_6, %c0_7] : memref<320x320xbf16, #tpu.memory_space<vmem>>, vector<320x320xbf16>
    %cst_8 = arith.constant dense<0.000000e+00> : vector<4x320xf32>
    %10 = tpu.matmul %8, %9, %cst_8 {dimension_numbers = #tpu.dot_dimension_numbers<[1], [0], [0], [1], [0, 0, 1, 1], [], []>} : vector<4x320xbf16>, vector<320x320xbf16>, vector<4x320xf32> -> vector<4x320xf32>
    %c0_9 = arith.constant 0 : index
    %c0_10 = arith.constant 0 : index
    %11 = vector.load %arg5[%c0_9, %c0_10] : memref<1x320xf32, #tpu.memory_space<vmem>>, vector<1x320xf32>
    %12 = vector.broadcast %11 : vector<1x320xf32> to vector<4x320xf32>
    %13 = arith.addf %10, %12 : vector<4x320xf32>
    %cst_11 = arith.constant 0.000000e+00 : f32
    %14 = vector.broadcast %cst_11 : f32 to vector<4x320xf32>
    %15 = arith.maximumf %13, %14 : vector<4x320xf32>
    %16 = arith.truncf %15 : vector<4x320xf32> to vector<4x320xbf16>
    %17 = vector.extract_strided_slice %16 {offsets = [0, 0], sizes = [2, 320], strides = [1, 1]} : vector<4x320xbf16> to vector<2x320xbf16>
    %18 = vector.extract_strided_slice %16 {offsets = [2, 0], sizes = [2, 320], strides = [1, 1]} : vector<4x320xbf16> to vector<2x320xbf16>
    %19 = tpu.concatenate %17, %18 in 1 : vector<2x320xbf16>, vector<2x320xbf16> -> vector<2x640xbf16>
    %c0_12 = arith.constant 0 : index
    %c0_13 = arith.constant 0 : index
    %20 = vector.load %arg6[%c0_12, %c0_13] : memref<640x128xbf16, #tpu.memory_space<vmem>>, vector<640x128xbf16>
    %cst_14 = arith.constant dense<0.000000e+00> : vector<2x128xf32>
    %21 = tpu.matmul %19, %20, %cst_14 {dimension_numbers = #tpu.dot_dimension_numbers<[1], [0], [0], [1], [0, 0, 1, 1], [], []>} : vector<2x640xbf16>, vector<640x128xbf16>, vector<2x128xf32> -> vector<2x128xf32>
    %c0_15 = arith.constant 0 : index
    %c0_16 = arith.constant 0 : index
    %22 = vector.load %arg7[%c0_15, %c0_16] : memref<1x128xf32, #tpu.memory_space<vmem>>, vector<1x128xf32>
    %23 = vector.broadcast %22 : vector<1x128xf32> to vector<2x128xf32>
    %24 = arith.addf %21, %23 : vector<2x128xf32>
    %c0_17 = arith.constant 0 : index
    %c0_18 = arith.constant 0 : index
    %25 = vector.load %arg8[%c0_17, %c0_18] : memref<2x128xf32, #tpu.memory_space<vmem>>, vector<2x128xf32>
    tpu.vector_store %arg8[%c0_17, %c0_18], %24 {strides = array<i32>} : memref<2x128xf32, #tpu.memory_space<vmem>>, vector<2x128xf32>,
    return
  }
  func.func @transform_0(%arg0: i32) -> (i32, i32) {
    %c0_i32 = arith.constant 0 : i32
    %c0_i32_0 = arith.constant 0 : i32
    return %arg0, %c0_i32 : i32, i32
  }
  func.func @transform_1(%arg0: i32) -> (i32, i32) {
    %c0_i32 = arith.constant 0 : i32
    %c0_i32_0 = arith.constant 0 : i32
    %c0_i32_1 = arith.constant 0 : i32
    return %c0_i32, %c0_i32_0 : i32, i32
  }
  func.func @transform_2(%arg0: i32) -> (i32, i32) {
    %c0_i32 = arith.constant 0 : i32
    %c0_i32_0 = arith.constant 0 : i32
    %c0_i32_1 = arith.constant 0 : i32
    return %c0_i32, %c0_i32_0 : i32, i32
  }
  func.func @transform_3(%arg0: i32) -> (i32, i32) {
    %c0_i32 = arith.constant 0 : i32
    %c0_i32_0 = arith.constant 0 : i32
    %c0_i32_1 = arith.constant 0 : i32
    return %c0_i32, %c0_i32_0 : i32, i32
  }
  func.func @transform_4(%arg0: i32) -> (i32, i32) {
    %c0_i32 = arith.constant 0 : i32
    %c0_i32_0 = arith.constant 0 : i32
    %c0_i32_1 = arith.constant 0 : i32
    return %c0_i32, %c0_i32_0 : i32, i32
  }
  func.func @transform_5(%arg0: i32) -> (i32, i32) {
    %c0_i32 = arith.constant 0 : i32
    %c0_i32_0 = arith.constant 0 : i32
    %c0_i32_1 = arith.constant 0 : i32
    return %c0_i32, %c0_i32_0 : i32, i32
  }
  func.func @transform_6(%arg0: i32) -> (i32, i32) {
    %c0_i32 = arith.constant 0 : i32
    %c0_i32_0 = arith.constant 0 : i32
    %c0_i32_1 = arith.constant 0 : i32
    return %c0_i32, %c0_i32_0 : i32, i32
  }
  func.func @transform_7(%arg0: i32) -> (i32, i32) {
    %c0_i32 = arith.constant 0 : i32
    %c0_i32_0 = arith.constant 0 : i32
    return %arg0, %c0_i32 : i32, i32
  }
}

</mosaic_0001>

<llo_original>
// kernel: tpu_custom_call.1
$region0: #{tpu_custom_call.1}
  #allocation0 [shape = 'u32[]', space=smem, size = 0x4, offset = 0x4, fixed_abs, tag = 'smem constant byte address 0x4 - core index']
  #allocation1 [shape = 'u32[72,128]{1,0:T(1,128)}', space=vmem, size = 0x9000, scoped, tag = 'internal scratch']
  %s0 = inlined_call_operand.hbm [shape: bf16[4,192], index: 0, kind: input, shape index: {}]
  %s1 = inlined_call_operand.hbm [shape: bf16[192,320], index: 1, kind: input, shape index: {}]
  %s2 = inlined_call_operand.hbm [shape: f32[1,320], index: 2, kind: input, shape index: {}]
  %s3 = inlined_call_operand.hbm [shape: bf16[320,320], index: 3, kind: input, shape index: {}]
  %s4 = inlined_call_operand.vmem [shape: f32[1,320], index: 4, kind: input, shape index: {}]
  %s5 = inlined_call_operand.hbm [shape: bf16[640,128], index: 5, kind: input, shape index: {}]
  %s6 = inlined_call_operand.vmem [shape: f32[1,128], index: 6, kind: input, shape index: {}]
  %s7 = inlined_call_operand.hbm [shape: f32[2,128], index: 7, kind: output, shape index: {}]
  %s8 = sld [smem:[#allocation0]]
  $region58: #{tpu_custom_call.1} parent=0
    _
  %s10 = ssub.s32 1, %s8
  %s11 = scalar_select 0, %s10, %s8
  $region1: #{tpu_custom_call.1} parent=0
    #allocation2 [shape = 'u8[2048]{0}', space=vmem, size = 0x800, scoped, tag = 'input window, operand 0, single buffered']
    #allocation3 [shape = 's32[1]{0}', space=sflag, size = 0x4, scoped, tag = 'scoped memory for tpu_custom_call.1']
    #allocation4 [shape = 's32[1]{0}', space=sflag, size = 0x4, scoped, tag = 'scoped memory for tpu_custom_call.1']
    #allocation5 [shape = 'u8[147456]{0}', space=vmem, size = 0x24000, scoped, tag = 'input window, operand 1, single buffered']
    #allocation6 [shape = 's32[1]{0}', space=sflag, size = 0x4, scoped, tag = 'scoped memory for tpu_custom_call.1']
    #allocation7 [shape = 'u8[1536]{0}', space=vmem, size = 0x800, scoped, tag = 'input window, operand 2, single buffered']
    #allocation8 [shape = 'u8[245760]{0}', space=vmem, size = 0x3c000, scoped, tag = 'input window, operand 3, single buffered']
    #allocation9 [shape = 's32[1]{0}', space=sflag, size = 0x4, scoped, tag = 'scoped memory for tpu_custom_call.1']
    #allocation10 [shape = 'u8[163840]{0}', space=vmem, size = 0x28000, scoped, tag = 'input window, operand 5, single buffered']
    #allocation11 [shape = 'u8[1024]{0}', space=vmem, size = 0x400, scoped, tag = 'output window, operand 0, single buffered']
    %12 = vsyncpa [#allocation3], 0
    %13 = vsyncpa [#allocation6], 0
    %14 = vsyncpa [#allocation9], 0
    %15 = vsyncpa [#allocation4], 0
    // Predicated region
    $region2: #{tpu_custom_call.1} parent=1 // pred_check
      _
    $region3: #{tpu_custom_call.1} parent=1 // pred_check_branch
      %17 = sbr.rel (0) target = $region5
    $region4: #{tpu_custom_call.1} parent=1 // pred_region
      %19 = vsyncadd [#allocation3], 0
      %s21 = sshll.u32 %s0, 4
      %s22 = int_to_ptr.hbm [resolvable:$true] %s21
      %s23 = sshll.u32 [#allocation2], 4
      %s24 = int_to_ptr.vmem [resolvable:$true] %s23
      %26 = dma.hbm_to_vmem [thread:$0]  %s22, 64, %s24, [#allocation3]
    $region5: #{tpu_custom_call.1} parent=1 // pred_fallthru
      _
    // Predicated region
    $region6: #{tpu_custom_call.1} parent=1 // pred_check
      _
    $region7: #{tpu_custom_call.1} parent=1 // pred_check_branch
      %28 = sbr.rel (0) target = $region9
    $region8: #{tpu_custom_call.1} parent=1 // pred_region
      %30 = vsyncadd [#allocation6], 0
      %s31 = sshll.u32 %s1, 4
      %s32 = int_to_ptr.hbm [resolvable:$true] %s31
      %s33 = sshll.u32 [#allocation5], 4
      %s34 = int_to_ptr.vmem [resolvable:$true] %s33
      %39 = dma.hbm_to_vmem [thread:$0]  %s32, 4608, %s34, [#allocation6], 192, 192, 12
    $region9: #{tpu_custom_call.1} parent=1 // pred_fallthru
      _
    // Predicated region
    $region10: #{tpu_custom_call.1} parent=1 // pred_check
      _
    $region11: #{tpu_custom_call.1} parent=1 // pred_check_branch
      %41 = sbr.rel (0) target = $region13
    $region12: #{tpu_custom_call.1} parent=1 // pred_region
      %43 = vsyncadd [#allocation6], 0
      %s45 = sshll.u32 %s2, 4
      %s46 = int_to_ptr.hbm [resolvable:$true] %s45
      %s47 = sshll.u32 [#allocation7], 4
      %s48 = int_to_ptr.vmem [resolvable:$true] %s47
      %50 = dma.hbm_to_vmem [thread:$0]  %s46, 48, %s48, [#allocation6]
    $region13: #{tpu_custom_call.1} parent=1 // pred_fallthru
      _
    // Predicated region
    $region14: #{tpu_custom_call.1} parent=1 // pred_check
      _
    $region15: #{tpu_custom_call.1} parent=1 // pred_check_branch
      %52 = sbr.rel (0) target = $region17
    $region16: #{tpu_custom_call.1} parent=1 // pred_region
      %54 = vsyncadd [#allocation9], 0
      %s55 = sshll.u32 %s3, 4
      %s56 = int_to_ptr.hbm [resolvable:$true] %s55
      %s57 = sshll.u32 [#allocation8], 4
      %s58 = int_to_ptr.vmem [resolvable:$true] %s57
      %63 = dma.hbm_to_vmem [thread:$0]  %s56, 7680, %s58, [#allocation9], 192, 192, 12
    $region17: #{tpu_custom_call.1} parent=1 // pred_fallthru
      _
    // Predicated region
    $region18: #{tpu_custom_call.1} parent=1 // pred_check
      _
    $region19: #{tpu_custom_call.1} parent=1 // pred_check_branch
      %65 = sbr.rel (0) target = $region21
    $region20: #{tpu_custom_call.1} parent=1 // pred_region
      _
    $region21: #{tpu_custom_call.1} parent=1 // pred_fallthru
      _
    // Predicated region
    $region22: #{tpu_custom_call.1} parent=1 // pred_check
      _
    $region23: #{tpu_custom_call.1} parent=1 // pred_check_branch
      %67 = sbr.rel (0) target = $region25
    $region24: #{tpu_custom_call.1} parent=1 // pred_region
      %69 = vsyncadd [#allocation9], 0
      %s70 = sshll.u32 %s5, 4
      %s71 = int_to_ptr.hbm [resolvable:$true] %s70
      %s72 = sshll.u32 [#allocation10], 4
      %s73 = int_to_ptr.vmem [resolvable:$true] %s72
      %78 = dma.hbm_to_vmem [thread:$0]  %s71, 5120, %s73, [#allocation9], 64, 64, 4
    $region25: #{tpu_custom_call.1} parent=1 // pred_fallthru
      _
    // Predicated region
    $region26: #{tpu_custom_call.1} parent=1 // pred_check
      _
    $region27: #{tpu_custom_call.1} parent=1 // pred_check_branch
      %80 = sbr.rel (0) target = $region29
    $region28: #{tpu_custom_call.1} parent=1 // pred_region
      _
    $region29: #{tpu_custom_call.1} parent=1 // pred_fallthru
      _
    // Predicated region
    $region30: #{tpu_custom_call.1} parent=1 // pred_check
      _
    $region31: #{tpu_custom_call.1} parent=1 // pred_check_branch
      %82 = sbr.rel (0) target = $region33
    $region32: #{tpu_custom_call.1} parent=1 // pred_region
      %84 = dma.done [#allocation3], 64
    $region33: #{tpu_custom_call.1} parent=1 // pred_fallthru
      _
    // Predicated region
    $region34: #{tpu_custom_call.1} parent=1 // pred_check
      _
    $region35: #{tpu_custom_call.1} parent=1 // pred_check_branch
      %86 = sbr.rel (0) target = $region37
    $region36: #{tpu_custom_call.1} parent=1 // pred_region
      %88 = dma.done [#allocation6], 4608
    $region37: #{tpu_custom_call.1} parent=1 // pred_fallthru
      _
    // Predicated region
    $region38: #{tpu_custom_call.1} parent=1 // pred_check
      _
    $region39: #{tpu_custom_call.1} parent=1 // pred_check_branch
      %90 = sbr.rel (0) target = $region41
    $region40: #{tpu_custom_call.1} parent=1 // pred_region
      %92 = dma.done [#allocation6], 48
    $region41: #{tpu_custom_call.1} parent=1 // pred_fallthru
      _
    // Predicated region
    $region42: #{tpu_custom_call.1} parent=1 // pred_check
      _
    $region43: #{tpu_custom_call.1} parent=1 // pred_check_branch
      %94 = sbr.rel (0) target = $region45
    $region44: #{tpu_custom_call.1} parent=1 // pred_region
      %96 = dma.done [#allocation9], 7680
    $region45: #{tpu_custom_call.1} parent=1 // pred_fallthru
      _
    // Predicated region
    $region46: #{tpu_custom_call.1} parent=1 // pred_check
      _
    $region47: #{tpu_custom_call.1} parent=1 // pred_check_branch
      %98 = sbr.rel (0) target = $region49
    $region48: #{tpu_custom_call.1} parent=1 // pred_region
      %100 = dma.done [#allocation9], 5120
    $region49: #{tpu_custom_call.1} parent=1 // pred_fallthru
      _
    %v102 = vld [vmem:[#allocation2] sm:$0xf]
    %v103 = vld [vmem:[#allocation5] sm:$0xff]
    %v104 = vld [vmem:[#allocation5 + $0x8] sm:$0xf]
    %v105 = vld [vmem:[#allocation5 + $0xc] sm:$0xff]
    %v106 = vld [vmem:[#allocation5 + $0x14] sm:$0xf]
    %v107 = vld [vmem:[#allocation5 + $0x18] sm:$0xff]
    %v108 = vld [vmem:[#allocation5 + $0x20] sm:$0xf]
    %v109 = vld [vmem:[#allocation5 + $0x24] sm:$0xff]
    %v110 = vld [vmem:[#allocation5 + $0x2c] sm:$0xf]
    %v111 = vld [vmem:[#allocation5 + $0x30] sm:$0xff]
    %v112 = vld [vmem:[#allocation5 + $0x38] sm:$0xf]
    %v113 = vld [vmem:[#allocation5 + $0x3c] sm:$0xff]
    %v114 = vld [vmem:[#allocation5 + $0x44] sm:$0xf]
    %v115 = vld [vmem:[#allocation5 + $0x48] sm:$0xff]
    %v116 = vld [vmem:[#allocation5 + $0x50] sm:$0xf]
    %v117 = vld [vmem:[#allocation5 + $0x54] sm:$0xff]
    %v118 = vld [vmem:[#allocation5 + $0x5c] sm:$0xf]
    %v119 = vld [vmem:[#allocation5 + $0x60] sm:$0xff]
    %v120 = vld [vmem:[#allocation5 + $0x68] sm:$0xf]
    %v121 = vld [vmem:[#allocation5 + $0x6c] sm:$0xff]
    %v122 = vld [vmem:[#allocation5 + $0x74] sm:$0xf]
    %v123 = vld [vmem:[#allocation5 + $0x78] sm:$0xff]
    %v124 = vld [vmem:[#allocation5 + $0x80] sm:$0xf]
    %v125 = vld [vmem:[#allocation5 + $0x84] sm:$0xff]
    %v126 = vld [vmem:[#allocation5 + $0x8c] sm:$0xf]
    %v127 = vld [vmem:[#allocation5 + $0x90] sm:$0xff]
    %v128 = vld [vmem:[#allocation5 + $0x98] sm:$0xf]
    %v129 = vld [vmem:[#allocation5 + $0x9c] sm:$0xff]
    %v130 = vld [vmem:[#allocation5 + $0xa4] sm:$0xf]
    %v131 = vld [vmem:[#allocation5 + $0xa8] sm:$0xff]
    %v132 = vld [vmem:[#allocation5 + $0xb0] sm:$0xf]
    %v133 = vld [vmem:[#allocation5 + $0xb4] sm:$0xff]
    %v134 = vld [vmem:[#allocation5 + $0xbc] sm:$0xf]
    %v135 = vld [vmem:[#allocation5 + $0xc0] sm:$0xff]
    %v136 = vld [vmem:[#allocation5 + $0xc8] sm:$0xf]
    %v137 = vld [vmem:[#allocation5 + $0xcc] sm:$0xff]
    %v138 = vld [vmem:[#allocation5 + $0xd4] sm:$0xf]
    %v139 = vld [vmem:[#allocation5 + $0xd8] sm:$0xff]
    %v140 = vld [vmem:[#allocation5 + $0xe0] sm:$0xf]
    %v141 = vld [vmem:[#allocation5 + $0xe4] sm:$0xff]
    %v142 = vld [vmem:[#allocation5 + $0xec] sm:$0xf]
    %v143 = vld [vmem:[#allocation5 + $0xf0] sm:$0xff]
    %v144 = vld [vmem:[#allocation5 + $0xf8] sm:$0xf]
    %v145 = vld [vmem:[#allocation5 + $0xfc] sm:$0xff]
    %v146 = vld [vmem:[#allocation5 + $0x104] sm:$0xf]
    %v147 = vld [vmem:[#allocation5 + $0x108] sm:$0xff]
    %v148 = vld [vmem:[#allocation5 + $0x110] sm:$0xf]
    %v149 = vld [vmem:[#allocation5 + $0x114] sm:$0xff]
    %v150 = vld [vmem:[#allocation5 + $0x11c] sm:$0xf]
    %v151 = vld [vmem:[#allocation7] sm:$0x7]
    %v153 = vperm.slane %v151, 0
    %v154 = vperm.slane %v151, 1
    %v155 = vperm.slane %v151, 2
    %160 = vst [vmem:[#allocation1] ss:$4 sm:$0xff] %v102
    %v161 = vld.sshfl [vmem:[#allocation1] sm:$0xff pattern:$0x73625140]
    %v162 = vld.sshfl [vmem:[#allocation1 + $0x8] sm:$0xff pattern:$0x73625140]
    %v212 = vunpack.c.l.b16 %v103
    %v213 = vunpack.c.h.b16 %v103
    %v214 = vunpack.c.l.b16 %v104
    %v215 = vunpack.c.l.b16 %v105
    %v216 = vunpack.c.h.b16 %v105
    %v217 = vunpack.c.l.b16 %v106
    %v218 = vunpack.c.l.b16 %v107
    %v219 = vunpack.c.h.b16 %v107
    %v220 = vunpack.c.l.b16 %v108
    %v221 = vunpack.c.l.b16 %v109
    %v222 = vunpack.c.h.b16 %v109
    %v223 = vunpack.c.l.b16 %v110
    %v224 = vunpack.c.l.b16 %v111
    %v225 = vunpack.c.h.b16 %v111
    %v226 = vunpack.c.l.b16 %v112
    %v227 = vunpack.c.l.b16 %v113
    %v228 = vunpack.c.h.b16 %v113
    %v229 = vunpack.c.l.b16 %v114
    %v230 = vunpack.c.l.b16 %v115
    %v231 = vunpack.c.h.b16 %v115
    %v232 = vunpack.c.l.b16 %v116
    %v233 = vunpack.c.l.b16 %v117
    %v234 = vunpack.c.h.b16 %v117
    %v235 = vunpack.c.l.b16 %v118
    %v236 = vunpack.c.l.b16 %v119
    %v237 = vunpack.c.h.b16 %v119
    %v238 = vunpack.c.l.b16 %v120
    %v239 = vunpack.c.l.b16 %v121
    %v240 = vunpack.c.h.b16 %v121
    %v241 = vunpack.c.l.b16 %v122
    %v242 = vunpack.c.l.b16 %v123
    %v243 = vunpack.c.h.b16 %v123
    %v244 = vunpack.c.l.b16 %v124
    %v245 = vunpack.c.l.b16 %v125
    %v246 = vunpack.c.h.b16 %v125
    %v247 = vunpack.c.l.b16 %v126
    %v248 = vunpack.c.l.b16 %v127
    %v249 = vunpack.c.h.b16 %v127
    %v250 = vunpack.c.l.b16 %v128
    %v251 = vunpack.c.l.b16 %v129
    %v252 = vunpack.c.h.b16 %v129
    %v253 = vunpack.c.l.b16 %v130
    %v254 = vunpack.c.l.b16 %v131
    %v255 = vunpack.c.h.b16 %v131
    %v256 = vunpack.c.l.b16 %v132
    %v257 = vunpack.c.l.b16 %v133
    %v258 = vunpack.c.h.b16 %v133
    %v259 = vunpack.c.l.b16 %v134
    %v260 = vunpack.c.l.b16 %v135
    %v261 = vunpack.c.h.b16 %v135
    %v262 = vunpack.c.l.b16 %v136
    %v263 = vunpack.c.l.b16 %v137
    %v264 = vunpack.c.h.b16 %v137
    %v265 = vunpack.c.l.b16 %v138
    %v266 = vunpack.c.l.b16 %v139
    %v267 = vunpack.c.h.b16 %v139
    %v268 = vunpack.c.l.b16 %v140
    %v269 = vunpack.c.l.b16 %v141
    %v270 = vunpack.c.h.b16 %v141
    %v271 = vunpack.c.l.b16 %v142
    %v272 = vunpack.c.l.b16 %v143
    %v273 = vunpack.c.h.b16 %v143
    %v274 = vunpack.c.l.b16 %v144
    %v275 = vunpack.c.l.b16 %v145
    %v276 = vunpack.c.h.b16 %v145
    %v277 = vunpack.c.l.b16 %v146
    %v278 = vunpack.c.l.b16 %v147
    %v279 = vunpack.c.h.b16 %v147
    %v280 = vunpack.c.l.b16 %v148
    %v281 = vunpack.c.l.b16 %v149
    %v282 = vunpack.c.h.b16 %v149
    %v283 = vunpack.c.l.b16 %v150
    %v284 = vpack.c.b16 %v215, %v212
    %v285 = vpack.c.b16 %v216, %v213
    %v286 = vpack.c.b16 %v217, %v214
    %v287 = vpack.c.b16 %v221, %v218
    %v288 = vpack.c.b16 %v222, %v219
    %v289 = vpack.c.b16 %v223, %v220
    %v290 = vpack.c.b16 %v227, %v224
    %v291 = vpack.c.b16 %v228, %v225
    %v292 = vpack.c.b16 %v229, %v226
    %v293 = vpack.c.b16 %v233, %v230
    %v294 = vpack.c.b16 %v234, %v231
    %v295 = vpack.c.b16 %v235, %v232
    %v296 = vpack.c.b16 %v239, %v236
    %v297 = vpack.c.b16 %v240, %v237
    %v298 = vpack.c.b16 %v241, %v238
    %v299 = vpack.c.b16 %v245, %v242
    %v300 = vpack.c.b16 %v246, %v243
    %v301 = vpack.c.b16 %v247, %v244
    %v302 = vpack.c.b16 %v251, %v248
    %v303 = vpack.c.b16 %v252, %v249
    %v304 = vpack.c.b16 %v253, %v250
    %v305 = vpack.c.b16 %v257, %v254
    %v306 = vpack.c.b16 %v258, %v255
    %v307 = vpack.c.b16 %v259, %v256
    %v308 = vpack.c.b16 %v263, %v260
    %v309 = vpack.c.b16 %v264, %v261
    %v310 = vpack.c.b16 %v265, %v262
    %v311 = vpack.c.b16 %v269, %v266
    %v312 = vpack.c.b16 %v270, %v267
    %v313 = vpack.c.b16 %v271, %v268
    %v314 = vpack.c.b16 %v275, %v272
    %v315 = vpack.c.b16 %v276, %v273
    %v316 = vpack.c.b16 %v277, %v274
    %v317 = vpack.c.b16 %v281, %v278
    %v318 = vpack.c.b16 %v282, %v279
    %v319 = vpack.c.b16 %v283, %v280
    %vm356 = vcmask 523264
    %v357 = vsel %vm356, %v162, 0
    %359 = vmatpush.bf16.msra.mxu0 %v305
    %360 = vmatpush.bf16.msra.mxu0 %v302
    %361 = vmatpush.bf16.msra.mxu0 %v299
    %362 = vmatpush.bf16.msra.mxu0 %v296
    %363 = vmatpush.bf16.msra.mxu0 %v293
    %364 = vmatpush.bf16.msra.mxu0 %v290
    %365 = vmatpush.bf16.msra.mxu0 %v287
    %366 = vmatpush.bf16.msra.mxu0 %v284
    %367 = vmatmul.bf16.gmra.mxu0 %v161
    %v368 = vpop.f32.mrf.mxu0
    %v369 = vadd.f32 %v153, %v368
    %v370 = vpop.f32.mrf.mxu0
    %371 = vdwg.mxu0
    %372 = vmatpush.bf16.msra.mxu0 0
    %373 = vmatpush.bf16.msra.mxu0 0
    %374 = vmatpush.bf16.msra.mxu0 0
    %375 = vmatpush.bf16.msra.mxu0 0
    %376 = vmatpush.bf16.msra.mxu0 %v317
    %377 = vmatpush.bf16.msra.mxu0 %v314
    %378 = vmatpush.bf16.msra.mxu0 %v311
    %379 = vmatpush.bf16.msra.mxu0 %v308
    %380 = vmatmul.bf16.gmra.mxu0 %v357
    %v381 = vpop.f32.mrf.mxu0
    %v382 = vadd.f32 %v369, %v381
    %v383 = vpop.f32.mrf.mxu0
    %384 = vdwg.mxu0
    %385 = vmatpush.bf16.msra.mxu0 %v306
    %386 = vmatpush.bf16.msra.mxu0 %v303
    %387 = vmatpush.bf16.msra.mxu0 %v300
    %388 = vmatpush.bf16.msra.mxu0 %v297
    %389 = vmatpush.bf16.msra.mxu0 %v294
    %390 = vmatpush.bf16.msra.mxu0 %v291
    %391 = vmatpush.bf16.msra.mxu0 %v288
    %392 = vmatpush.bf16.msra.mxu0 %v285
    %393 = vmatmul.bf16.gmra.mxu0 %v161
    %v394 = vpop.f32.mrf.mxu0
    %v395 = vadd.f32 %v154, %v394
    %v396 = vpop.f32.mrf.mxu0
    %397 = vdwg.mxu0
    %398 = vmatpush.bf16.msra.mxu0 0
    %399 = vmatpush.bf16.msra.mxu0 0
    %400 = vmatpush.bf16.msra.mxu0 0
    %401 = vmatpush.bf16.msra.mxu0 0
    %402 = vmatpush.bf16.msra.mxu0 %v318
    %403 = vmatpush.bf16.msra.mxu0 %v315
    %404 = vmatpush.bf16.msra.mxu0 %v312
    %405 = vmatpush.bf16.msra.mxu0 %v309
    %406 = vmatmul.bf16.gmra.mxu0 %v357
    %v407 = vpop.f32.mrf.mxu0
    %v408 = vadd.f32 %v395, %v407
    %v409 = vpop.f32.mrf.mxu0
    %410 = vdwg.mxu0
    %411 = vmatpush.bf16.msra.mxu0 %v307
    %412 = vmatpush.bf16.msra.mxu0 %v304
    %413 = vmatpush.bf16.msra.mxu0 %v301
    %414 = vmatpush.bf16.msra.mxu0 %v298
    %415 = vmatpush.bf16.msra.mxu0 %v295
    %416 = vmatpush.bf16.msra.mxu0 %v292
    %417 = vmatpush.bf16.msra.mxu0 %v289
    %418 = vmatpush.bf16.msra.mxu0 %v286
    %419 = vmatmul.bf16.gmra.mxu0 %v161
    %v420 = vpop.f32.mrf.mxu0
    %v421 = vadd.f32 %v155, %v420
    %v422 = vpop.f32.mrf.mxu0
    %423 = vdwg.mxu0
    %424 = vmatpush.bf16.msra.mxu0 0
    %425 = vmatpush.bf16.msra.mxu0 0
    %426 = vmatpush.bf16.msra.mxu0 0
    %427 = vmatpush.bf16.msra.mxu0 0
    %428 = vmatpush.bf16.msra.mxu0 %v319
    %429 = vmatpush.bf16.msra.mxu0 %v316
    %430 = vmatpush.bf16.msra.mxu0 %v313
    %431 = vmatpush.bf16.msra.mxu0 %v310
    %432 = vmatmul.bf16.gmra.mxu0 %v357
    %v433 = vpop.f32.mrf.mxu0
    %v434 = vadd.f32 %v421, %v433
    %v435 = vpop.f32.mrf.mxu0
    %436 = vdwg.mxu0
    %v437 = vmax.f32 %v382, 0.0
    %v438 = vmax.f32 %v408, 0.0
    %v439 = vmax.f32 %v434, 0.0
    %v440 = vpack.c.bf16 %v437, %v437
    %v441 = vpack.c.bf16 %v438, %v438
    %v442 = vpack.c.bf16 %v439, %v439
    %v443 = vld [vmem:[#allocation8] sm:$0xff]
    %v444 = vld [vmem:[#allocation8 + $0x8] sm:$0xf]
    %v445 = vld [vmem:[#allocation8 + $0xc] sm:$0xff]
    %v446 = vld [vmem:[#allocation8 + $0x14] sm:$0xf]
    %v447 = vld [vmem:[#allocation8 + $0x18] sm:$0xff]
    %v448 = vld [vmem:[#allocation8 + $0x20] sm:$0xf]
    %v449 = vld [vmem:[#allocation8 + $0x24] sm:$0xff]
    %v450 = vld [vmem:[#allocation8 + $0x2c] sm:$0xf]
    %v451 = vld [vmem:[#allocation8 + $0x30] sm:$0xff]
    %v452 = vld [vmem:[#allocation8 + $0x38] sm:$0xf]
    %v453 = vld [vmem:[#allocation8 + $0x3c] sm:$0xff]
    %v454 = vld [vmem:[#allocation8 + $0x44] sm:$0xf]
    %v455 = vld [vmem:[#allocation8 + $0x48] sm:$0xff]
    %v456 = vld [vmem:[#allocation8 + $0x50] sm:$0xf]
    %v457 = vld [vmem:[#allocation8 + $0x54] sm:$0xff]
    %v458 = vld [vmem:[#allocation8 + $0x5c] sm:$0xf]
    %v459 = vld [vmem:[#allocation8 + $0x60] sm:$0xff]
    %v460 = vld [vmem:[#allocation8 + $0x68] sm:$0xf]
    %v461 = vld [vmem:[#allocation8 + $0x6c] sm:$0xff]
    %v462 = vld [vmem:[#allocation8 + $0x74] sm:$0xf]
    %v463 = vld [vmem:[#allocation8 + $0x78] sm:$0xff]
    %v464 = vld [vmem:[#allocation8 + $0x80] sm:$0xf]
    %v465 = vld [vmem:[#allocation8 + $0x84] sm:$0xff]
    %v466 = vld [vmem:[#allocation8 + $0x8c] sm:$0xf]
    %v467 = vld [vmem:[#allocation8 + $0x90] sm:$0xff]
    %v468 = vld [vmem:[#allocation8 + $0x98] sm:$0xf]
    %v469 = vld [vmem:[#allocation8 + $0x9c] sm:$0xff]
    %v470 = vld [vmem:[#allocation8 + $0xa4] sm:$0xf]
    %v471 = vld [vmem:[#allocation8 + $0xa8] sm:$0xff]
    %v472 = vld [vmem:[#allocation8 + $0xb0] sm:$0xf]
    %v473 = vld [vmem:[#allocation8 + $0xb4] sm:$0xff]
    %v474 = vld [vmem:[#allocation8 + $0xbc] sm:$0xf]
    %v475 = vld [vmem:[#allocation8 + $0xc0] sm:$0xff]
    %v476 = vld [vmem:[#allocation8 + $0xc8] sm:$0xf]
    %v477 = vld [vmem:[#allocation8 + $0xcc] sm:$0xff]
    %v478 = vld [vmem:[#allocation8 + $0xd4] sm:$0xf]
    %v479 = vld [vmem:[#allocation8 + $0xd8] sm:$0xff]
    %v480 = vld [vmem:[#allocation8 + $0xe0] sm:$0xf]
    %v481 = vld [vmem:[#allocation8 + $0xe4] sm:$0xff]
    %v482 = vld [vmem:[#allocation8 + $0xec] sm:$0xf]
    %v483 = vld [vmem:[#allocation8 + $0xf0] sm:$0xff]
    %v484 = vld [vmem:[#allocation8 + $0xf8] sm:$0xf]
    %v485 = vld [vmem:[#allocation8 + $0xfc] sm:$0xff]
    %v486 = vld [vmem:[#allocation8 + $0x104] sm:$0xf]
    %v487 = vld [vmem:[#allocation8 + $0x108] sm:$0xff]
    %v488 = vld [vmem:[#allocation8 + $0x110] sm:$0xf]
    %v489 = vld [vmem:[#allocation8 + $0x114] sm:$0xff]
    %v490 = vld [vmem:[#allocation8 + $0x11c] sm:$0xf]
    %v491 = vld [vmem:[#allocation8 + $0x120] sm:$0xff]
    %v492 = vld [vmem:[#allocation8 + $0x128] sm:$0xf]
    %v493 = vld [vmem:[#allocation8 + $0x12c] sm:$0xff]
    %v494 = vld [vmem:[#allocation8 + $0x134] sm:$0xf]
    %v495 = vld [vmem:[#allocation8 + $0x138] sm:$0xff]
    %v496 = vld [vmem:[#allocation8 + $0x140] sm:$0xf]
    %v497 = vld [vmem:[#allocation8 + $0x144] sm:$0xff]
    %v498 = vld [vmem:[#allocation8 + $0x14c] sm:$0xf]
    %v499 = vld [vmem:[#allocation8 + $0x150] sm:$0xff]
    %v500 = vld [vmem:[#allocation8 + $0x158] sm:$0xf]
    %v501 = vld [vmem:[#allocation8 + $0x15c] sm:$0xff]
    %v502 = vld [vmem:[#allocation8 + $0x164] sm:$0xf]
    %v503 = vld [vmem:[#allocation8 + $0x168] sm:$0xff]
    %v504 = vld [vmem:[#allocation8 + $0x170] sm:$0xf]
    %v505 = vld [vmem:[#allocation8 + $0x174] sm:$0xff]
    %v506 = vld [vmem:[#allocation8 + $0x17c] sm:$0xf]
    %v507 = vld [vmem:[#allocation8 + $0x180] sm:$0xff]
    %v508 = vld [vmem:[#allocation8 + $0x188] sm:$0xf]
    %v509 = vld [vmem:[#allocation8 + $0x18c] sm:$0xff]
    %v510 = vld [vmem:[#allocation8 + $0x194] sm:$0xf]
    %v511 = vld [vmem:[#allocation8 + $0x198] sm:$0xff]
    %v512 = vld [vmem:[#allocation8 + $0x1a0] sm:$0xf]
    %v513 = vld [vmem:[#allocation8 + $0x1a4] sm:$0xff]
    %v514 = vld [vmem:[#allocation8 + $0x1ac] sm:$0xf]
    %v515 = vld [vmem:[#allocation8 + $0x1b0] sm:$0xff]
    %v516 = vld [vmem:[#allocation8 + $0x1b8] sm:$0xf]
    %v517 = vld [vmem:[#allocation8 + $0x1bc] sm:$0xff]
    %v518 = vld [vmem:[#allocation8 + $0x1c4] sm:$0xf]
    %v519 = vld [vmem:[#allocation8 + $0x1c8] sm:$0xff]
    %v520 = vld [vmem:[#allocation8 + $0x1d0] sm:$0xf]
    %v521 = vld [vmem:[#allocation8 + $0x1d4] sm:$0xff]
    %v522 = vld [vmem:[#allocation8 + $0x1dc] sm:$0xf]
    %v523 = vld [vmem:[%s4] sm:$0x7]
    %v525 = vperm.slane %v523, 0
    %v526 = vperm.slane %v523, 1
    %v527 = vperm.slane %v523, 2
    %v611 = vunpack.c.l.b16 %v443
    %v612 = vunpack.c.h.b16 %v443
    %v613 = vunpack.c.l.b16 %v444
    %v614 = vunpack.c.l.b16 %v445
    %v615 = vunpack.c.h.b16 %v445
    %v616 = vunpack.c.l.b16 %v446
    %v617 = vunpack.c.l.b16 %v447
    %v618 = vunpack.c.h.b16 %v447
    %v619 = vunpack.c.l.b16 %v448
    %v620 = vunpack.c.l.b16 %v449
    %v621 = vunpack.c.h.b16 %v449
    %v622 = vunpack.c.l.b16 %v450
    %v623 = vunpack.c.l.b16 %v451
    %v624 = vunpack.c.h.b16 %v451
    %v625 = vunpack.c.l.b16 %v452
    %v626 = vunpack.c.l.b16 %v453
    %v627 = vunpack.c.h.b16 %v453
    %v628 = vunpack.c.l.b16 %v454
    %v629 = vunpack.c.l.b16 %v455
    %v630 = vunpack.c.h.b16 %v455
    %v631 = vunpack.c.l.b16 %v456
    %v632 = vunpack.c.l.b16 %v457
    %v633 = vunpack.c.h.b16 %v457
    %v634 = vunpack.c.l.b16 %v458
    %v635 = vunpack.c.l.b16 %v459
    %v636 = vunpack.c.h.b16 %v459
    %v637 = vunpack.c.l.b16 %v460
    %v638 = vunpack.c.l.b16 %v461
    %v639 = vunpack.c.h.b16 %v461
    %v640 = vunpack.c.l.b16 %v462
    %v641 = vunpack.c.l.b16 %v463
    %v642 = vunpack.c.h.b16 %v463
    %v643 = vunpack.c.l.b16 %v464
    %v644 = vunpack.c.l.b16 %v465
    %v645 = vunpack.c.h.b16 %v465
    %v646 = vunpack.c.l.b16 %v466
    %v647 = vunpack.c.l.b16 %v467
    %v648 = vunpack.c.h.b16 %v467
    %v649 = vunpack.c.l.b16 %v468
    %v650 = vunpack.c.l.b16 %v469
    %v651 = vunpack.c.h.b16 %v469
    %v652 = vunpack.c.l.b16 %v470
    %v653 = vunpack.c.l.b16 %v471
    %v654 = vunpack.c.h.b16 %v471
    %v655 = vunpack.c.l.b16 %v472
    %v656 = vunpack.c.l.b16 %v473
    %v657 = vunpack.c.h.b16 %v473
    %v658 = vunpack.c.l.b16 %v474
    %v659 = vunpack.c.l.b16 %v475
    %v660 = vunpack.c.h.b16 %v475
    %v661 = vunpack.c.l.b16 %v476
    %v662 = vunpack.c.l.b16 %v477
    %v663 = vunpack.c.h.b16 %v477
    %v664 = vunpack.c.l.b16 %v478
    %v665 = vunpack.c.l.b16 %v479
    %v666 = vunpack.c.h.b16 %v479
    %v667 = vunpack.c.l.b16 %v480
    %v668 = vunpack.c.l.b16 %v481
    %v669 = vunpack.c.h.b16 %v481
    %v670 = vunpack.c.l.b16 %v482
    %v671 = vunpack.c.l.b16 %v483
    %v672 = vunpack.c.h.b16 %v483
    %v673 = vunpack.c.l.b16 %v484
    %v674 = vunpack.c.l.b16 %v485
    %v675 = vunpack.c.h.b16 %v485
    %v676 = vunpack.c.l.b16 %v486
    %v677 = vunpack.c.l.b16 %v487
    %v678 = vunpack.c.h.b16 %v487
    %v679 = vunpack.c.l.b16 %v488
    %v680 = vunpack.c.l.b16 %v489
    %v681 = vunpack.c.h.b16 %v489
    %v682 = vunpack.c.l.b16 %v490
    %v683 = vunpack.c.l.b16 %v491
    %v684 = vunpack.c.h.b16 %v491
    %v685 = vunpack.c.l.b16 %v492
    %v686 = vunpack.c.l.b16 %v493
    %v687 = vunpack.c.h.b16 %v493
    %v688 = vunpack.c.l.b16 %v494
    %v689 = vunpack.c.l.b16 %v495
    %v690 = vunpack.c.h.b16 %v495
    %v691 = vunpack.c.l.b16 %v496
    %v692 = vunpack.c.l.b16 %v497
    %v693 = vunpack.c.h.b16 %v497
    %v694 = vunpack.c.l.b16 %v498
    %v695 = vunpack.c.l.b16 %v499
    %v696 = vunpack.c.h.b16 %v499
    %v697 = vunpack.c.l.b16 %v500
    %v698 = vunpack.c.l.b16 %v501
    %v699 = vunpack.c.h.b16 %v501
    %v700 = vunpack.c.l.b16 %v502
    %v701 = vunpack.c.l.b16 %v503
    %v702 = vunpack.c.h.b16 %v503
    %v703 = vunpack.c.l.b16 %v504
    %v704 = vunpack.c.l.b16 %v505
    %v705 = vunpack.c.h.b16 %v505
    %v706 = vunpack.c.l.b16 %v506
    %v707 = vunpack.c.l.b16 %v507
    %v708 = vunpack.c.h.b16 %v507
    %v709 = vunpack.c.l.b16 %v508
    %v710 = vunpack.c.l.b16 %v509
    %v711 = vunpack.c.h.b16 %v509
    %v712 = vunpack.c.l.b16 %v510
    %v713 = vunpack.c.l.b16 %v511
    %v714 = vunpack.c.h.b16 %v511
    %v715 = vunpack.c.l.b16 %v512
    %v716 = vunpack.c.l.b16 %v513
    %v717 = vunpack.c.h.b16 %v513
    %v718 = vunpack.c.l.b16 %v514
    %v719 = vunpack.c.l.b16 %v515
    %v720 = vunpack.c.h.b16 %v515
    %v721 = vunpack.c.l.b16 %v516
    %v722 = vunpack.c.l.b16 %v517
    %v723 = vunpack.c.h.b16 %v517
    %v724 = vunpack.c.l.b16 %v518
    %v725 = vunpack.c.l.b16 %v519
    %v726 = vunpack.c.h.b16 %v519
    %v727 = vunpack.c.l.b16 %v520
    %v728 = vunpack.c.l.b16 %v521
    %v729 = vunpack.c.h.b16 %v521
    %v730 = vunpack.c.l.b16 %v522
    %v731 = vpack.c.b16 %v614, %v611
    %v732 = vpack.c.b16 %v615, %v612
    %v733 = vpack.c.b16 %v616, %v613
    %v734 = vpack.c.b16 %v620, %v617
    %v735 = vpack.c.b16 %v621, %v618
    %v736 = vpack.c.b16 %v622, %v619
    %v737 = vpack.c.b16 %v626, %v623
    %v738 = vpack.c.b16 %v627, %v624
    %v739 = vpack.c.b16 %v628, %v625
    %v740 = vpack.c.b16 %v632, %v629
    %v741 = vpack.c.b16 %v633, %v630
    %v742 = vpack.c.b16 %v634, %v631
    %v743 = vpack.c.b16 %v638, %v635
    %v744 = vpack.c.b16 %v639, %v636
    %v745 = vpack.c.b16 %v640, %v637
    %v746 = vpack.c.b16 %v644, %v641
    %v747 = vpack.c.b16 %v645, %v642
    %v748 = vpack.c.b16 %v646, %v643
    %v749 = vpack.c.b16 %v650, %v647
    %v750 = vpack.c.b16 %v651, %v648
    %v751 = vpack.c.b16 %v652, %v649
    %v752 = vpack.c.b16 %v656, %v653
    %v753 = vpack.c.b16 %v657, %v654
    %v754 = vpack.c.b16 %v658, %v655
    %v755 = vpack.c.b16 %v662, %v659
    %v756 = vpack.c.b16 %v663, %v660
    %v757 = vpack.c.b16 %v664, %v661
    %v758 = vpack.c.b16 %v668, %v665
    %v759 = vpack.c.b16 %v669, %v666
    %v760 = vpack.c.b16 %v670, %v667
    %v761 = vpack.c.b16 %v674, %v671
    %v762 = vpack.c.b16 %v675, %v672
    %v763 = vpack.c.b16 %v676, %v673
    %v764 = vpack.c.b16 %v680, %v677
    %v765 = vpack.c.b16 %v681, %v678
    %v766 = vpack.c.b16 %v682, %v679
    %v767 = vpack.c.b16 %v686, %v683
    %v768 = vpack.c.b16 %v687, %v684
    %v769 = vpack.c.b16 %v688, %v685
    %v770 = vpack.c.b16 %v692, %v689
    %v771 = vpack.c.b16 %v693, %v690
    %v772 = vpack.c.b16 %v694, %v691
    %v773 = vpack.c.b16 %v698, %v695
    %v774 = vpack.c.b16 %v699, %v696
    %v775 = vpack.c.b16 %v700, %v697
    %v776 = vpack.c.b16 %v704, %v701
    %v777 = vpack.c.b16 %v705, %v702
    %v778 = vpack.c.b16 %v706, %v703
    %v779 = vpack.c.b16 %v710, %v707
    %v780 = vpack.c.b16 %v711, %v708
    %v781 = vpack.c.b16 %v712, %v709
    %v782 = vpack.c.b16 %v716, %v713
    %v783 = vpack.c.b16 %v717, %v714
    %v784 = vpack.c.b16 %v718, %v715
    %v785 = vpack.c.b16 %v722, %v719
    %v786 = vpack.c.b16 %v723, %v720
    %v787 = vpack.c.b16 %v724, %v721
    %v788 = vpack.c.b16 %v728, %v725
    %v789 = vpack.c.b16 %v729, %v726
    %v790 = vpack.c.b16 %v730, %v727
    %v852 = vsel %vm356, %v442, 0
    %854 = vmatpush.bf16.msra.mxu0 %v752
    %855 = vmatpush.bf16.msra.mxu0 %v749
    %856 = vmatpush.bf16.msra.mxu0 %v746
    %857 = vmatpush.bf16.msra.mxu0 %v743
    %858 = vmatpush.bf16.msra.mxu0 %v740
    %859 = vmatpush.bf16.msra.mxu0 %v737
    %860 = vmatpush.bf16.msra.mxu0 %v734
    %861 = vmatpush.bf16.msra.mxu0 %v731
    %862 = vmatmul.bf16.gmra.mxu0 %v440
    %v863 = vpop.f32.mrf.mxu0
    %v864 = vadd.f32 %v525, %v863
    %v865 = vpop.f32.mrf.mxu0
    %866 = vdwg.mxu0
    %867 = vmatpush.bf16.msra.mxu0 %v776
    %868 = vmatpush.bf16.msra.mxu0 %v773
    %869 = vmatpush.bf16.msra.mxu0 %v770
    %870 = vmatpush.bf16.msra.mxu0 %v767
    %871 = vmatpush.bf16.msra.mxu0 %v764
    %872 = vmatpush.bf16.msra.mxu0 %v761
    %873 = vmatpush.bf16.msra.mxu0 %v758
    %874 = vmatpush.bf16.msra.mxu0 %v755
    %875 = vmatmul.bf16.gmra.mxu0 %v441
    %v876 = vpop.f32.mrf.mxu0
    %v877 = vadd.f32 %v864, %v876
    %v878 = vpop.f32.mrf.mxu0
    %879 = vdwg.mxu0
    %880 = vmatpush.bf16.msra.mxu0 0
    %881 = vmatpush.bf16.msra.mxu0 0
    %882 = vmatpush.bf16.msra.mxu0 0
    %883 = vmatpush.bf16.msra.mxu0 0
    %884 = vmatpush.bf16.msra.mxu0 %v788
    %885 = vmatpush.bf16.msra.mxu0 %v785
    %886 = vmatpush.bf16.msra.mxu0 %v782
    %887 = vmatpush.bf16.msra.mxu0 %v779
    %888 = vmatmul.bf16.gmra.mxu0 %v852
    %v889 = vpop.f32.mrf.mxu0
    %v890 = vadd.f32 %v877, %v889
    %v891 = vpop.f32.mrf.mxu0
    %892 = vdwg.mxu0
    %893 = vmatpush.bf16.msra.mxu0 %v753
    %894 = vmatpush.bf16.msra.mxu0 %v750
    %895 = vmatpush.bf16.msra.mxu0 %v747
    %896 = vmatpush.bf16.msra.mxu0 %v744
    %897 = vmatpush.bf16.msra.mxu0 %v741
    %898 = vmatpush.bf16.msra.mxu0 %v738
    %899 = vmatpush.bf16.msra.mxu0 %v735
    %900 = vmatpush.bf16.msra.mxu0 %v732
    %901 = vmatmul.bf16.gmra.mxu0 %v440
    %v902 = vpop.f32.mrf.mxu0
    %v903 = vadd.f32 %v526, %v902
    %v904 = vpop.f32.mrf.mxu0
    %905 = vdwg.mxu0
    %906 = vmatpush.bf16.msra.mxu0 %v777
    %907 = vmatpush.bf16.msra.mxu0 %v774
    %908 = vmatpush.bf16.msra.mxu0 %v771
    %909 = vmatpush.bf16.msra.mxu0 %v768
    %910 = vmatpush.bf16.msra.mxu0 %v765
    %911 = vmatpush.bf16.msra.mxu0 %v762
    %912 = vmatpush.bf16.msra.mxu0 %v759
    %913 = vmatpush.bf16.msra.mxu0 %v756
    %914 = vmatmul.bf16.gmra.mxu0 %v441
    %v915 = vpop.f32.mrf.mxu0
    %v916 = vadd.f32 %v903, %v915
    %v917 = vpop.f32.mrf.mxu0
    %918 = vdwg.mxu0
    %919 = vmatpush.bf16.msra.mxu0 0
    %920 = vmatpush.bf16.msra.mxu0 0
    %921 = vmatpush.bf16.msra.mxu0 0
    %922 = vmatpush.bf16.msra.mxu0 0
    %923 = vmatpush.bf16.msra.mxu0 %v789
    %924 = vmatpush.bf16.msra.mxu0 %v786
    %925 = vmatpush.bf16.msra.mxu0 %v783
    %926 = vmatpush.bf16.msra.mxu0 %v780
    %927 = vmatmul.bf16.gmra.mxu0 %v852
    %v928 = vpop.f32.mrf.mxu0
    %v929 = vadd.f32 %v916, %v928
    %v930 = vpop.f32.mrf.mxu0
    %931 = vdwg.mxu0
    %932 = vmatpush.bf16.msra.mxu0 %v754
    %933 = vmatpush.bf16.msra.mxu0 %v751
    %934 = vmatpush.bf16.msra.mxu0 %v748
    %935 = vmatpush.bf16.msra.mxu0 %v745
    %936 = vmatpush.bf16.msra.mxu0 %v742
    %937 = vmatpush.bf16.msra.mxu0 %v739
    %938 = vmatpush.bf16.msra.mxu0 %v736
    %939 = vmatpush.bf16.msra.mxu0 %v733
    %940 = vmatmul.bf16.gmra.mxu0 %v440
    %v941 = vpop.f32.mrf.mxu0
    %v942 = vadd.f32 %v527, %v941
    %v943 = vpop.f32.mrf.mxu0
    %944 = vdwg.mxu0
    %945 = vmatpush.bf16.msra.mxu0 %v778
    %946 = vmatpush.bf16.msra.mxu0 %v775
    %947 = vmatpush.bf16.msra.mxu0 %v772
    %948 = vmatpush.bf16.msra.mxu0 %v769
    %949 = vmatpush.bf16.msra.mxu0 %v766
    %950 = vmatpush.bf16.msra.mxu0 %v763
    %951 = vmatpush.bf16.msra.mxu0 %v760
    %952 = vmatpush.bf16.msra.mxu0 %v757
    %953 = vmatmul.bf16.gmra.mxu0 %v441
    %v954 = vpop.f32.mrf.mxu0
    %v955 = vadd.f32 %v942, %v954
    %v956 = vpop.f32.mrf.mxu0
    %957 = vdwg.mxu0
    %958 = vmatpush.bf16.msra.mxu0 0
    %959 = vmatpush.bf16.msra.mxu0 0
    %960 = vmatpush.bf16.msra.mxu0 0
    %961 = vmatpush.bf16.msra.mxu0 0
    %962 = vmatpush.bf16.msra.mxu0 %v790
    %963 = vmatpush.bf16.msra.mxu0 %v787
    %964 = vmatpush.bf16.msra.mxu0 %v784
    %965 = vmatpush.bf16.msra.mxu0 %v781
    %966 = vmatmul.bf16.gmra.mxu0 %v852
    %v967 = vpop.f32.mrf.mxu0
    %v968 = vadd.f32 %v955, %v967
    %v969 = vpop.f32.mrf.mxu0
    %970 = vdwg.mxu0
    %v971 = vmax.f32 %v890, 0.0
    %v972 = vmax.f32 %v929, 0.0
    %v973 = vmax.f32 %v968, 0.0
    %v974 = vpack.c.bf16 %v972, %v971
    %v975 = vpack.c.bf16 %v973, %v973
    %v978 = vunpack.c.l.b16 %v974
    %v979 = vunpack.c.h.b16 %v974
    %v980 = vunpack.c.l.b16 %v975
    %v981 = vpack.c.b16 %v978, %v978
    %v982 = vpack.c.b16 %v979, %v979
    %v983 = vpack.c.b16 %v980, %v980
    %v986 = vrot.slane %v981, 1
    %v987 = vrot.slane %v982, 1
    %v988 = vrot.slane %v983, 1
    %989 = vrot.lane.b32.xlu0 %v986, 64
    %v990 = vpop.permute.xlu0 %989
    %991 = vrot.lane.b32.xlu0 %v987, 64
    %v992 = vpop.permute.xlu0 %991
    %993 = vrot.lane.b32.xlu0 %v988, 64
    %v994 = vpop.permute.xlu0 %993
    %vm995 = vcmask 523264
    %v996 = vsel %vm995, %v990, %v992
    %v997 = vsel %vm995, %v992, %v994
    %v1002 = vsel %vm356, %v983, %v990
    %v1004 = vld [vmem:[#allocation10] sm:$0xf]
    %v1005 = vld [vmem:[#allocation10 + $0x4] sm:$0xf]
    %v1006 = vld [vmem:[#allocation10 + $0x8] sm:$0xf]
    %v1007 = vld [vmem:[#allocation10 + $0xc] sm:$0xf]
    %v1008 = vld [vmem:[#allocation10 + $0x10] sm:$0xf]
    %v1009 = vld [vmem:[#allocation10 + $0x14] sm:$0xf]
    %v1010 = vld [vmem:[#allocation10 + $0x18] sm:$0xf]
    %v1011 = vld [vmem:[#allocation10 + $0x1c] sm:$0xf]
    %v1012 = vld [vmem:[#allocation10 + $0x20] sm:$0xf]
    %v1013 = vld [vmem:[#allocation10 + $0x24] sm:$0xf]
    %v1014 = vld [vmem:[#allocation10 + $0x28] sm:$0xf]
    %v1015 = vld [vmem:[#allocation10 + $0x2c] sm:$0xf]
    %v1016 = vld [vmem:[#allocation10 + $0x30] sm:$0xf]
    %v1017 = vld [vmem:[#allocation10 + $0x34] sm:$0xf]
    %v1018 = vld [vmem:[#allocation10 + $0x38] sm:$0xf]
    %v1019 = vld [vmem:[#allocation10 + $0x3c] sm:$0xf]
    %v1020 = vld [vmem:[#allocation10 + $0x40] sm:$0xf]
    %v1021 = vld [vmem:[#allocation10 + $0x44] sm:$0xf]
    %v1022 = vld [vmem:[#allocation10 + $0x48] sm:$0xf]
    %v1023 = vld [vmem:[#allocation10 + $0x4c] sm:$0xf]
    %v1024 = vld [vmem:[#allocation10 + $0x50] sm:$0xf]
    %v1025 = vld [vmem:[#allocation10 + $0x54] sm:$0xf]
    %v1026 = vld [vmem:[#allocation10 + $0x58] sm:$0xf]
    %v1027 = vld [vmem:[#allocation10 + $0x5c] sm:$0xf]
    %v1028 = vld [vmem:[#allocation10 + $0x60] sm:$0xf]
    %v1029 = vld [vmem:[#allocation10 + $0x64] sm:$0xf]
    %v1030 = vld [vmem:[#allocation10 + $0x68] sm:$0xf]
    %v1031 = vld [vmem:[#allocation10 + $0x6c] sm:$0xf]
    %v1032 = vld [vmem:[#allocation10 + $0x70] sm:$0xf]
    %v1033 = vld [vmem:[#allocation10 + $0x74] sm:$0xf]
    %v1034 = vld [vmem:[#allocation10 + $0x78] sm:$0xf]
    %v1035 = vld [vmem:[#allocation10 + $0x7c] sm:$0xf]
    %v1036 = vld [vmem:[#allocation10 + $0x80] sm:$0xf]
    %v1037 = vld [vmem:[#allocation10 + $0x84] sm:$0xf]
    %v1038 = vld [vmem:[#allocation10 + $0x88] sm:$0xf]
    %v1039 = vld [vmem:[#allocation10 + $0x8c] sm:$0xf]
    %v1040 = vld [vmem:[#allocation10 + $0x90] sm:$0xf]
    %v1041 = vld [vmem:[#allocation10 + $0x94] sm:$0xf]
    %v1042 = vld [vmem:[#allocation10 + $0x98] sm:$0xf]
    %v1043 = vld [vmem:[#allocation10 + $0x9c] sm:$0xf]
    %v1044 = vld [vmem:[#allocation10 + $0xa0] sm:$0xf]
    %v1045 = vld [vmem:[#allocation10 + $0xa4] sm:$0xf]
    %v1046 = vld [vmem:[#allocation10 + $0xa8] sm:$0xf]
    %v1047 = vld [vmem:[#allocation10 + $0xac] sm:$0xf]
    %v1048 = vld [vmem:[#allocation10 + $0xb0] sm:$0xf]
    %v1049 = vld [vmem:[#allocation10 + $0xb4] sm:$0xf]
    %v1050 = vld [vmem:[#allocation10 + $0xb8] sm:$0xf]
    %v1051 = vld [vmem:[#allocation10 + $0xbc] sm:$0xf]
    %v1052 = vld [vmem:[#allocation10 + $0xc0] sm:$0xf]
    %v1053 = vld [vmem:[#allocation10 + $0xc4] sm:$0xf]
    %v1054 = vld [vmem:[#allocation10 + $0xc8] sm:$0xf]
    %v1055 = vld [vmem:[#allocation10 + $0xcc] sm:$0xf]
    %v1056 = vld [vmem:[#allocation10 + $0xd0] sm:$0xf]
    %v1057 = vld [vmem:[#allocation10 + $0xd4] sm:$0xf]
    %v1058 = vld [vmem:[#allocation10 + $0xd8] sm:$0xf]
    %v1059 = vld [vmem:[#allocation10 + $0xdc] sm:$0xf]
    %v1060 = vld [vmem:[#allocation10 + $0xe0] sm:$0xf]
    %v1061 = vld [vmem:[#allocation10 + $0xe4] sm:$0xf]
    %v1062 = vld [vmem:[#allocation10 + $0xe8] sm:$0xf]
    %v1063 = vld [vmem:[#allocation10 + $0xec] sm:$0xf]
    %v1064 = vld [vmem:[#allocation10 + $0xf0] sm:$0xf]
    %v1065 = vld [vmem:[#allocation10 + $0xf4] sm:$0xf]
    %v1066 = vld [vmem:[#allocation10 + $0xf8] sm:$0xf]
    %v1067 = vld [vmem:[#allocation10 + $0xfc] sm:$0xf]
    %v1068 = vld [vmem:[#allocation10 + $0x100] sm:$0xf]
    %v1069 = vld [vmem:[#allocation10 + $0x104] sm:$0xf]
    %v1070 = vld [vmem:[#allocation10 + $0x108] sm:$0xf]
    %v1071 = vld [vmem:[#allocation10 + $0x10c] sm:$0xf]
    %v1072 = vld [vmem:[#allocation10 + $0x110] sm:$0xf]
    %v1073 = vld [vmem:[#allocation10 + $0x114] sm:$0xf]
    %v1074 = vld [vmem:[#allocation10 + $0x118] sm:$0xf]
    %v1075 = vld [vmem:[#allocation10 + $0x11c] sm:$0xf]
    %v1076 = vld [vmem:[#allocation10 + $0x120] sm:$0xf]
    %v1077 = vld [vmem:[#allocation10 + $0x124] sm:$0xf]
    %v1078 = vld [vmem:[#allocation10 + $0x128] sm:$0xf]
    %v1079 = vld [vmem:[#allocation10 + $0x12c] sm:$0xf]
    %v1080 = vld [vmem:[#allocation10 + $0x130] sm:$0xf]
    %v1081 = vld [vmem:[#allocation10 + $0x134] sm:$0xf]
    %v1082 = vld [vmem:[#allocation10 + $0x138] sm:$0xf]
    %v1083 = vld [vmem:[#allocation10 + $0x13c] sm:$0xf]
    %v1084 = vld [vmem:[%s6] sm:$0x1]
    %v1086 = vperm.slane %v1084, 0
    %v1168 = vunpack.c.l.b16 %v1004
    %v1169 = vunpack.c.l.b16 %v1005
    %v1170 = vunpack.c.l.b16 %v1006
    %v1171 = vunpack.c.l.b16 %v1007
    %v1172 = vunpack.c.l.b16 %v1008
    %v1173 = vunpack.c.l.b16 %v1009
    %v1174 = vunpack.c.l.b16 %v1010
    %v1175 = vunpack.c.l.b16 %v1011
    %v1176 = vunpack.c.l.b16 %v1012
    %v1177 = vunpack.c.l.b16 %v1013
    %v1178 = vunpack.c.l.b16 %v1014
    %v1179 = vunpack.c.l.b16 %v1015
    %v1180 = vunpack.c.l.b16 %v1016
    %v1181 = vunpack.c.l.b16 %v1017
    %v1182 = vunpack.c.l.b16 %v1018
    %v1183 = vunpack.c.l.b16 %v1019
    %v1184 = vunpack.c.l.b16 %v1020
    %v1185 = vunpack.c.l.b16 %v1021
    %v1186 = vunpack.c.l.b16 %v1022
    %v1187 = vunpack.c.l.b16 %v1023
    %v1188 = vunpack.c.l.b16 %v1024
    %v1189 = vunpack.c.l.b16 %v1025
    %v1190 = vunpack.c.l.b16 %v1026
    %v1191 = vunpack.c.l.b16 %v1027
    %v1192 = vunpack.c.l.b16 %v1028
    %v1193 = vunpack.c.l.b16 %v1029
    %v1194 = vunpack.c.l.b16 %v1030
    %v1195 = vunpack.c.l.b16 %v1031
    %v1196 = vunpack.c.l.b16 %v1032
    %v1197 = vunpack.c.l.b16 %v1033
    %v1198 = vunpack.c.l.b16 %v1034
    %v1199 = vunpack.c.l.b16 %v1035
    %v1200 = vunpack.c.l.b16 %v1036
    %v1201 = vunpack.c.l.b16 %v1037
    %v1202 = vunpack.c.l.b16 %v1038
    %v1203 = vunpack.c.l.b16 %v1039
    %v1204 = vunpack.c.l.b16 %v1040
    %v1205 = vunpack.c.l.b16 %v1041
    %v1206 = vunpack.c.l.b16 %v1042
    %v1207 = vunpack.c.l.b16 %v1043
    %v1208 = vunpack.c.l.b16 %v1044
    %v1209 = vunpack.c.l.b16 %v1045
    %v1210 = vunpack.c.l.b16 %v1046
    %v1211 = vunpack.c.l.b16 %v1047
    %v1212 = vunpack.c.l.b16 %v1048
    %v1213 = vunpack.c.l.b16 %v1049
    %v1214 = vunpack.c.l.b16 %v1050
    %v1215 = vunpack.c.l.b16 %v1051
    %v1216 = vunpack.c.l.b16 %v1052
    %v1217 = vunpack.c.l.b16 %v1053
    %v1218 = vunpack.c.l.b16 %v1054
    %v1219 = vunpack.c.l.b16 %v1055
    %v1220 = vunpack.c.l.b16 %v1056
    %v1221 = vunpack.c.l.b16 %v1057
    %v1222 = vunpack.c.l.b16 %v1058
    %v1223 = vunpack.c.l.b16 %v1059
    %v1224 = vunpack.c.l.b16 %v1060
    %v1225 = vunpack.c.l.b16 %v1061
    %v1226 = vunpack.c.l.b16 %v1062
    %v1227 = vunpack.c.l.b16 %v1063
    %v1228 = vunpack.c.l.b16 %v1064
    %v1229 = vunpack.c.l.b16 %v1065
    %v1230 = vunpack.c.l.b16 %v1066
    %v1231 = vunpack.c.l.b16 %v1067
    %v1232 = vunpack.c.l.b16 %v1068
    %v1233 = vunpack.c.l.b16 %v1069
    %v1234 = vunpack.c.l.b16 %v1070
    %v1235 = vunpack.c.l.b16 %v1071
    %v1236 = vunpack.c.l.b16 %v1072
    %v1237 = vunpack.c.l.b16 %v1073
    %v1238 = vunpack.c.l.b16 %v1074
    %v1239 = vunpack.c.l.b16 %v1075
    %v1240 = vunpack.c.l.b16 %v1076
    %v1241 = vunpack.c.l.b16 %v1077
    %v1242 = vunpack.c.l.b16 %v1078
    %v1243 = vunpack.c.l.b16 %v1079
    %v1244 = vunpack.c.l.b16 %v1080
    %v1245 = vunpack.c.l.b16 %v1081
    %v1246 = vunpack.c.l.b16 %v1082
    %v1247 = vunpack.c.l.b16 %v1083
    %v1248 = vpack.c.b16 %v1169, %v1168
    %v1249 = vpack.c.b16 %v1171, %v1170
    %v1250 = vpack.c.b16 %v1173, %v1172
    %v1251 = vpack.c.b16 %v1175, %v1174
    %v1252 = vpack.c.b16 %v1177, %v1176
    %v1253 = vpack.c.b16 %v1179, %v1178
    %v1254 = vpack.c.b16 %v1181, %v1180
    %v1255 = vpack.c.b16 %v1183, %v1182
    %v1256 = vpack.c.b16 %v1185, %v1184
    %v1257 = vpack.c.b16 %v1187, %v1186
    %v1258 = vpack.c.b16 %v1189, %v1188
    %v1259 = vpack.c.b16 %v1191, %v1190
    %v1260 = vpack.c.b16 %v1193, %v1192
    %v1261 = vpack.c.b16 %v1195, %v1194
    %v1262 = vpack.c.b16 %v1197, %v1196
    %v1263 = vpack.c.b16 %v1199, %v1198
    %v1264 = vpack.c.b16 %v1201, %v1200
    %v1265 = vpack.c.b16 %v1203, %v1202
    %v1266 = vpack.c.b16 %v1205, %v1204
    %v1267 = vpack.c.b16 %v1207, %v1206
    %v1268 = vpack.c.b16 %v1209, %v1208
    %v1269 = vpack.c.b16 %v1211, %v1210
    %v1270 = vpack.c.b16 %v1213, %v1212
    %v1271 = vpack.c.b16 %v1215, %v1214
    %v1272 = vpack.c.b16 %v1217, %v1216
    %v1273 = vpack.c.b16 %v1219, %v1218
    %v1274 = vpack.c.b16 %v1221, %v1220
    %v1275 = vpack.c.b16 %v1223, %v1222
    %v1276 = vpack.c.b16 %v1225, %v1224
    %v1277 = vpack.c.b16 %v1227, %v1226
    %v1278 = vpack.c.b16 %v1229, %v1228
    %v1279 = vpack.c.b16 %v1231, %v1230
    %v1280 = vpack.c.b16 %v1233, %v1232
    %v1281 = vpack.c.b16 %v1235, %v1234
    %v1282 = vpack.c.b16 %v1237, %v1236
    %v1283 = vpack.c.b16 %v1239, %v1238
    %v1284 = vpack.c.b16 %v1241, %v1240
    %v1285 = vpack.c.b16 %v1243, %v1242
    %v1286 = vpack.c.b16 %v1245, %v1244
    %v1287 = vpack.c.b16 %v1247, %v1246
    %1328 = vmatpush.bf16.msra.mxu0 %v1255
    %1329 = vmatpush.bf16.msra.mxu0 %v1254
    %1330 = vmatpush.bf16.msra.mxu0 %v1253
    %1331 = vmatpush.bf16.msra.mxu0 %v1252
    %1332 = vmatpush.bf16.msra.mxu0 %v1251
    %1333 = vmatpush.bf16.msra.mxu0 %v1250
    %1334 = vmatpush.bf16.msra.mxu0 %v1249
    %1335 = vmatpush.bf16.msra.mxu0 %v1248
    %1336 = vmatmul.bf16.gmra.mxu0 %v981
    %v1337 = vpop.f32.mrf.mxu0
    %v1338 = vadd.f32 %v1086, %v1337
    %v1339 = vpop.f32.mrf.mxu0
    %1340 = vdwg.mxu0
    %1341 = vmatpush.bf16.msra.mxu0 %v1263
    %1342 = vmatpush.bf16.msra.mxu0 %v1262
    %1343 = vmatpush.bf16.msra.mxu0 %v1261
    %1344 = vmatpush.bf16.msra.mxu0 %v1260
    %1345 = vmatpush.bf16.msra.mxu0 %v1259
    %1346 = vmatpush.bf16.msra.mxu0 %v1258
    %1347 = vmatpush.bf16.msra.mxu0 %v1257
    %1348 = vmatpush.bf16.msra.mxu0 %v1256
    %1349 = vmatmul.bf16.gmra.mxu0 %v982
    %v1350 = vpop.f32.mrf.mxu0
    %v1351 = vadd.f32 %v1338, %v1350
    %v1352 = vpop.f32.mrf.mxu0
    %1353 = vdwg.mxu0
    %1354 = vmatpush.bf16.msra.mxu0 %v1271
    %1355 = vmatpush.bf16.msra.mxu0 %v1270
    %1356 = vmatpush.bf16.msra.mxu0 %v1269
    %1357 = vmatpush.bf16.msra.mxu0 %v1268
    %1358 = vmatpush.bf16.msra.mxu0 %v1267
    %1359 = vmatpush.bf16.msra.mxu0 %v1266
    %1360 = vmatpush.bf16.msra.mxu0 %v1265
    %1361 = vmatpush.bf16.msra.mxu0 %v1264
    %1362 = vmatmul.bf16.gmra.mxu0 %v1002
    %v1363 = vpop.f32.mrf.mxu0
    %v1364 = vadd.f32 %v1351, %v1363
    %v1365 = vpop.f32.mrf.mxu0
    %1366 = vdwg.mxu0
    %1367 = vmatpush.bf16.msra.mxu0 %v1279
    %1368 = vmatpush.bf16.msra.mxu0 %v1278
    %1369 = vmatpush.bf16.msra.mxu0 %v1277
    %1370 = vmatpush.bf16.msra.mxu0 %v1276
    %1371 = vmatpush.bf16.msra.mxu0 %v1275
    %1372 = vmatpush.bf16.msra.mxu0 %v1274
    %1373 = vmatpush.bf16.msra.mxu0 %v1273
    %1374 = vmatpush.bf16.msra.mxu0 %v1272
    %1375 = vmatmul.bf16.gmra.mxu0 %v996
    %v1376 = vpop.f32.mrf.mxu0
    %v1377 = vadd.f32 %v1364, %v1376
    %v1378 = vpop.f32.mrf.mxu0
    %1379 = vdwg.mxu0
    %1380 = vmatpush.bf16.msra.mxu0 %v1287
    %1381 = vmatpush.bf16.msra.mxu0 %v1286
    %1382 = vmatpush.bf16.msra.mxu0 %v1285
    %1383 = vmatpush.bf16.msra.mxu0 %v1284
    %1384 = vmatpush.bf16.msra.mxu0 %v1283
    %1385 = vmatpush.bf16.msra.mxu0 %v1282
    %1386 = vmatpush.bf16.msra.mxu0 %v1281
    %1387 = vmatpush.bf16.msra.mxu0 %v1280
    %1388 = vmatmul.bf16.gmra.mxu0 %v997
    %v1389 = vpop.f32.mrf.mxu0
    %v1390 = vadd.f32 %v1377, %v1389
    %v1391 = vpop.f32.mrf.mxu0
    %1392 = vdwg.mxu0
    %1393 = vst [vmem:[#allocation11] sm:$0x3] %v1390
    // Predicated region
    $region50: #{tpu_custom_call.1} parent=1 // pred_check
      _
    $region51: #{tpu_custom_call.1} parent=1 // pred_check_branch
      %1395 = sbr.rel (0) target = $region53
    $region52: #{tpu_custom_call.1} parent=1 // pred_region
      %1397 = vsyncadd [#allocation4], 0
      %s1399 = sshll.u32 [#allocation11], 4
      %s1400 = int_to_ptr.vmem [resolvable:$true] %s1399
      %s1401 = sshll.u32 %s7, 4
      %s1402 = int_to_ptr.hbm [resolvable:$true] %s1401
      %1404 = dma.vmem_to_hbm [thread:$0]  %s1400, 32, %s1402, [#allocation4]
    $region53: #{tpu_custom_call.1} parent=1 // pred_fallthru
      _
    // Predicated region
    $region54: #{tpu_custom_call.1} parent=1 // pred_check
      _
    $region55: #{tpu_custom_call.1} parent=1 // pred_check_branch
      %1406 = sbr.rel (0) target = $region57
    $region56: #{tpu_custom_call.1} parent=1 // pred_region
      %1408 = dma.done [#allocation4], 32
    $region57: #{tpu_custom_call.1} parent=1 // pred_fallthru
      _
    %1409 = vsyncpa [#allocation3], 1
    %1410 = vsyncpa [#allocation6], 1
    %1411 = vsyncpa [#allocation9], 1
    %1412 = vsyncpa [#allocation4], 1

</llo_original>
